<compile_context>
chip_gen: v7x
topology: tpu7x:2x2x1
jax: 0.10.0
libtpu: 0.0.40
codegen_flags: <defaults>
</compile_context>

<pallas_src>
from collections import OrderedDict

import numpy as np
import jax
import jax.numpy as jnp
from jax.experimental import pallas as pl
from jax.experimental.pallas import tpu as pltpu


# ----------------------------------------------------------------------------
# helpers (host-side only; the kernel never evaluates them)
# ----------------------------------------------------------------------------
def _round_up(x, m):
    return ((x + m - 1) // m) * m


def _dist_fn_np(name):
    """Numpy distribution fn ('linear' == identity)."""
    if name == "linear":
        return lambda x: x
    return getattr(np, name)


# ----------------------------------------------------------------------------
# kernel: broadcast the resident (1, tL) table block over Bt batch rows
# ----------------------------------------------------------------------------
def _broadcast_table_kernel(tbl_ref, out_ref):
    # tbl_ref block: (1, tL)  -- same block index across the inner (batch)
    #                            grid axis, so it is DMA'd once per lane tile
    #                            and stays resident in VMEM.
    # out_ref block: (Bt, tL) -- tL is a multiple of 128 (lane-dense) so the
    #                            stores are unmasked.
    out_ref[...] = jnp.broadcast_to(tbl_ref[...], out_ref.shape)


def _choose_tiling(B, L_pad, itemsize):
    """Pick (Bt, tL) output block shape.

    * ~4 MiB output blocks (store-bandwidth bound).
    * sublane granule is dtype-aware (8 for f32, 16 for bf16, 32 for int8).
    * outputs >= ~2 MiB are split into >= 2 parallel blocks so both v7x
      TensorCores get work (harmless on single-TC v5e/v6e).
    """
    TARGET_BLOCK_BYTES = 4 << 20
    MAX_LANE_BYTES = 2 << 20
    MIN_SPLIT_BYTES = 2 << 20
    sub = max(8, 32 // itemsize)                      # dtype-aware sublane granule

    row_bytes = L_pad * itemsize
    if row_bytes <= MAX_LANE_BYTES:
        tL = L_pad                                     # full dim -> legal
    else:
        tL = max(128, ((MAX_LANE_BYTES // itemsize) // 128) * 128)  # mult of 128

    max_rows = max(1, TARGET_BLOCK_BYTES // (tL * itemsize))
    if B <= sub:
        Bt = B                                         # full dim -> legal
    else:
        Bt = min(B, max(sub, (max_rows // sub) * sub))  # mult of sub, or == B

    total = B * L_pad * itemsize
    if total >= MIN_SPLIT_BYTES and pl.cdiv(B, Bt) * pl.cdiv(L_pad, tL) < 2:
        # Force >= 2 parallel grid steps (v7x has 2 TensorCores per chip).
        if B >= 2 * sub:
            Bt = _round_up(pl.cdiv(B, 2), sub)
        elif L_pad >= 256:
            tL = max(128, _round_up(pl.cdiv(L_pad, 2), 128))
    return Bt, tL


# ----------------------------------------------------------------------------
# module
# ----------------------------------------------------------------------------
class DataAgnosticStaticQueries:
    """JAX/Pallas port of the PyTorch DataAgnosticStaticQueries module."""

    def __init__(self, resolution=None, minimum=None, maximum=None,
                 transformation=None, distribution=None, materialize=True,
                 **kwargs):
        self.resolution = list(resolution) if resolution is not None else []
        self.minimum = list(minimum) if minimum is not None else []
        self.maximum = list(maximum) if maximum is not None else []
        # TODO(synk): arbitrary nn.Module `transformation` (coordinate transforms)
        # is applied outside the kernel as a plain JAX callable (default: identity).
        self.transformation = transformation if transformation is not None else (lambda x: x)
        if distribution is None:
            self.distribution = ["linear"] * len(self.resolution)
        elif isinstance(distribution, (list, tuple)):
            self.distribution = list(distribution)
        else:
            self.distribution = [distribution] * len(self.resolution)
        assert (len(self.resolution) == len(self.minimum)
                == len(self.maximum) == len(self.distribution))
        # When the downstream consumer can fuse a broadcast, set
        # materialize=False to skip the HBM writes entirely.
        self.materialize = materialize

        self._N = int(np.prod(self.resolution)) if self.resolution else 1
        self._D = len(self.resolution)
        self._table_cache = {}                 # dtype name -> (1, L_pad) device array

    # -- host-side precompute (matches torch linspace -> dist -> min/max scale)
    def _compute_table(self, comp_dtype):
        axes = []
        for r, mi, ma, dist in zip(self.resolution, self.minimum,
                                   self.maximum, self.distribution):
            lin = np.linspace(0.0, 1.0, r, dtype=comp_dtype)
            fx = _dist_fn_np(dist)(lin).astype(comp_dtype)
            fmin = fx.min()
            denom = fx.max() - fx.min()
            if np.isclose(float(denom), 0.0):   # mirrors torch.isclose(denominator, 0) -> 1.0
                denom = np.asarray(1.0, dtype=comp_dtype)
            axes.append(((fx - fmin) / denom * (ma - mi) + mi).astype(comp_dtype))
        mesh = np.meshgrid(*axes, indexing="ij")
        return np.stack([m.reshape(-1) for m in mesh], axis=-1)   # (N, D)

    def _device_table(self, dtype):
        """Cached, lane-padded (1, L_pad) table in the target dtype."""
        key = dtype.name
        if key not in self._table_cache:
            comp = np.float64 if dtype == np.dtype("float64") else np.float32
            tbl = self._compute_table(comp)                         # (N, D)
            L = self._N * self._D
            L_pad = _round_up(max(L, 1), 128)
            flat = np.zeros((1, L_pad), dtype=comp)
            flat[0, :L] = tbl.reshape(-1)
            self._table_cache[key] = jnp.asarray(flat, dtype=dtype)
        return self._table_cache[key]

    @staticmethod
    def _get_input_array(batch):
        if isinstance(batch, dict):
            return batch[list(batch.keys())[0]]
        if isinstance(batch, (list, tuple, set)):
            return list(batch)[0]
        return batch

    def __call__(self, batch):
        x = self._get_input_array(batch)
        B = int(x.shape[0])
        # Note: like the torch module, output dtype is inherited from the batch
        # (bf16 / int batches quantize the coordinates exactly as torch would).
        dtype = jnp.dtype(x.dtype)
        N, D = self._N, self._D
        L = N * D
        itemsize = dtype.itemsize

        table = self._device_table(dtype)          # (1, L_pad)
        L_pad = int(table.shape[1])

        if not self.materialize:
            # Lazy broadcast: XLA fuses it into whatever consumes 'center',
            # removing all B*L HBM writes of redundant rows.
            queries = jnp.broadcast_to(table[:, :L].reshape(1, N, D), (B, N, D))
            return OrderedDict({"center": self.transformation(queries)})

        Bt, tL = _choose_tiling(B, L_pad, itemsize)
        # Batch axis innermost: the table block index (0, l) is constant across
        # consecutive grid steps, so Pallas skips re-DMAing the table tile.
        grid = (pl.cdiv(L_pad, tL), pl.cdiv(B, Bt))

        flat = pl.pallas_call(
            _broadcast_table_kernel,
            out_shape=jax.ShapeDtypeStruct((B, L_pad), dtype),
            grid=grid,
            in_specs=[pl.BlockSpec((1, tL), lambda l, b: (0, l))],
            out_specs=pl.BlockSpec((Bt, tL), lambda l, b: (b, l)),
            compiler_params=pltpu.CompilerParams(
                dimension_semantics=("parallel", "parallel")),
            cost_estimate=pl.CostEstimate(
                flops=0,
                transcendentals=0,
                bytes_accessed=(B * L_pad + grid[0] * tL) * itemsize),
        )(table)

        queries = flat[:, :L] if L_pad != L else flat
        queries = queries.reshape(B, N, D)         # free: row-major flatten inverse
        queries = self.transformation(queries)
        return OrderedDict({"center": queries})


# ----------------------------------------------------------------------------
# self-test
# ----------------------------------------------------------------------------
def _ref_table(resolution, minimum, maximum, distribution):
    """Pure-numpy float32 reference of the torch forward pass."""
    axes = []
    for r, mi, ma, dist in zip(resolution, minimum, maximum, distribution):
        lin = np.linspace(0.0, 1.0, r, dtype=np.float32)
        fx = _dist_fn_np(dist)(lin).astype(np.float32)
        denom = fx.max() - fx.min()
        if np.isclose(float(denom), 0.0):
            denom = np.float32(1.0)
        axes.append(((fx - fx.min()) / denom * (ma - mi) + mi).astype(np.float32))
    mesh = np.meshgrid(*axes, indexing="ij")
    return np.stack([m.reshape(-1) for m in mesh], axis=-1).astype(np.float32)


if __name__ == "__main__":
    key = jax.random.PRNGKey(0)
    # Synthetic input batch (NCHW; only shape[0] / dtype are used by the module).
    x = jax.random.normal(key, (2, 4, 16, 16), dtype=jnp.float32)

    resolution = [4, 8, 4]          # N = 128 query points, D = 3, L = 384 (128-aligned)
    minimum = [-10.0, -5.0, 0.0]
    maximum = [10.0, 5.0, 2.0]

    module = DataAgnosticStaticQueries(resolution=resolution,
                                       minimum=minimum, maximum=maximum)
    out = module(x)
    center = jax.block_until_ready(out["center"])

    ref = _ref_table(resolution, minimum, maximum, module.distribution)
    ref = np.broadcast_to(ref[None], (x.shape[0],) + ref.shape)
    assert center.shape == (2, 4 * 8 * 4, 3), center.shape
    assert center.dtype == x.dtype
    np.testing.assert_allclose(np.asarray(center), ref, rtol=1e-5, atol=1e-5)

    # Lazy (fused-broadcast) path matches the materialized path.
    module_lazy = DataAgnosticStaticQueries(resolution=resolution,
                                            minimum=minimum, maximum=maximum,
                                            materialize=False)
    center_lazy = jax.block_until_ready(module_lazy(x)["center"])
    np.testing.assert_allclose(np.asarray(center_lazy), np.asarray(center),
                               rtol=0, atol=0)

    # Non-linear distribution + larger batch.
    module2 = DataAgnosticStaticQueries(resolution=[8, 16],
                                        minimum=[0.0, -1.0],
                                        maximum=[1.0, 1.0],
                                        distribution=["exp", "linear"])
    x2 = jax.random.normal(jax.random.PRNGKey(1), (16, 3, 8, 8), dtype=jnp.float32)
    out2 = module2(x2)
    center2 = jax.block_until_ready(out2["center"])
    ref2 = _ref_table([8, 16], [0.0, -1.0], [1.0, 1.0], module2.distribution)
    ref2 = np.broadcast_to(ref2[None], (x2.shape[0],) + ref2.shape)
    assert center2.shape == (16, 8 * 16, 2), center2.shape
    np.testing.assert_allclose(np.asarray(center2), ref2, rtol=1e-5, atol=1e-5)

    # Unaligned L (padded lane path) + bfloat16 batch (dtype-aware granule).
    module3 = DataAgnosticStaticQueries(resolution=[5, 6, 2],
                                        minimum=[-1.0, -2.0, 0.0],
                                        maximum=[1.0, 2.0, 4.0])
    x3 = jax.random.normal(jax.random.PRNGKey(2), (4, 3, 8, 8), dtype=jnp.bfloat16)
    out3 = module3(x3)
    center3 = jax.block_until_ready(out3["center"])
    assert center3.shape == (4, 5 * 6 * 2, 3), center3.shape
    assert center3.dtype == jnp.bfloat16
    ref3 = _ref_table([5, 6, 2], [-1.0, -2.0, 0.0], [1.0, 2.0, 4.0],
                      module3.distribution)
    exp3 = np.asarray(jnp.asarray(ref3, dtype=jnp.bfloat16).astype(jnp.float32))
    got3 = np.asarray(center3.astype(jnp.float32))
    np.testing.assert_allclose(got3, np.broadcast_to(exp3[None], got3.shape),
                               rtol=1e-2, atol=1e-2)

    print("KERNEL_OK")
</pallas_src>

<mosaic_0001>
module attributes {stable_mosaic.version = 11 : i64} {
  func.func @_broadcast_table_kernel(%arg0: i32, %arg1: i32, %arg2: memref<1x384xf32, #tpu.memory_space<vmem>>, %arg3: memref<2x384xf32, #tpu.memory_space<vmem>>) attributes {dimension_semantics = [#tpu.dimension_semantics<parallel>, #tpu.dimension_semantics<parallel>], iteration_bounds = array<i64: 1, 1>, scalar_prefetch = 0 : i64, scratch_operands = 0 : i64, tpu.core_type = #tpu.core_type<tc>, window_params = [{transform_indices = @transform_0, window_bounds = array<i64: 1, 384>}, {transform_indices = @transform_1, window_bounds = array<i64: 2, 384>}]} {
    %c0 = arith.constant 0 : index
    %c0_0 = arith.constant 0 : index
    %0 = vector.load %arg2[%c0, %c0_0] : memref<1x384xf32, #tpu.memory_space<vmem>>, vector<1x384xf32>
    %1 = vector.shape_cast %0 : vector<1x384xf32> to vector<1x384xf32>
    %2 = vector.broadcast %1 : vector<1x384xf32> to vector<2x384xf32>
    %c0_1 = arith.constant 0 : index
    %c0_2 = arith.constant 0 : index
    %3 = vector.load %arg3[%c0_1, %c0_2] : memref<2x384xf32, #tpu.memory_space<vmem>>, vector<2x384xf32>
    tpu.vector_store %arg3[%c0_1, %c0_2], %2 {strides = array<i32>} : memref<2x384xf32, #tpu.memory_space<vmem>>, vector<2x384xf32>,
    return
  }
  func.func @transform_0(%arg0: i32, %arg1: i32) -> (i32, i32) {
    %c0_i32 = arith.constant 0 : i32
    %c0_i32_0 = arith.constant 0 : i32
    return %c0_i32, %arg0 : i32, i32
  }
  func.func @transform_1(%arg0: i32, %arg1: i32) -> (i32, i32) {
    %c0_i32 = arith.constant 0 : i32
    return %arg1, %arg0 : i32, i32
  }
}

</mosaic_0001>

<llo_original>
// kernel: tpu_custom_call.1
$region0: #{tpu_custom_call.1}
  #allocation0 [shape = 'u32[]', space=smem, size = 0x4, offset = 0x4, fixed_abs, tag = 'smem constant byte address 0x4 - core index']
  #allocation1 [shape = 'u32[144,128]{1,0:T(1,128)}', space=vmem, size = 0x12000, scoped, tag = 'internal scratch']
  %s0 = inlined_call_operand.hbm [shape: f32[1,384], index: 0, kind: input, shape index: {}]
  %s1 = inlined_call_operand.hbm [shape: f32[2,384], index: 1, kind: output, shape index: {}]
  %s2 = sld [smem:[#allocation0]]
  $region18: #{tpu_custom_call.1} parent=0
    _
  %s4 = ssub.s32 1, %s2
  %s5 = scalar_select 0, %s4, %s2
  $region1: #{tpu_custom_call.1} parent=0
    #allocation2 [shape = 'u8[1536]{0}', space=vmem, size = 0x800, scoped, tag = 'input window, operand 0, single buffered']
    #allocation3 [shape = 's32[1]{0}', space=sflag, size = 0x4, scoped, tag = 'scoped memory for tpu_custom_call.1']
    #allocation4 [shape = 's32[1]{0}', space=sflag, size = 0x4, scoped, tag = 'scoped memory for tpu_custom_call.1']
    #allocation5 [shape = 'u8[3072]{0}', space=vmem, size = 0xc00, scoped, tag = 'output window, operand 0, single buffered']
    %6 = vsyncpa [#allocation3], 0
    %7 = vsyncpa [#allocation4], 0
    // Predicated region
    $region2: #{tpu_custom_call.1} parent=1 // pred_check
      _
    $region3: #{tpu_custom_call.1} parent=1 // pred_check_branch
      %9 = sbr.rel (0) target = $region5
    $region4: #{tpu_custom_call.1} parent=1 // pred_region
      %s11 = ssub.s32 48, 48
      %12 = vsyncadd [#allocation3], %s11
      %s14 = sshll.u32 [#allocation2], 4
      %s15 = int_to_ptr.vmem [resolvable:$true] %s14
      %17 = dma.hbm_to_vmem [thread:$0]  %s0, 48, %s15, [#allocation3]
    $region5: #{tpu_custom_call.1} parent=1 // pred_fallthru
      _
    // Predicated region
    $region6: #{tpu_custom_call.1} parent=1 // pred_check
      _
    $region7: #{tpu_custom_call.1} parent=1 // pred_check_branch
      %19 = sbr.rel (0) target = $region9
    $region8: #{tpu_custom_call.1} parent=1 // pred_region
      %20 = dma.done [#allocation3], 48
    $region9: #{tpu_custom_call.1} parent=1 // pred_fallthru
      _
    %v21 = vld [vmem:[#allocation2] sm:$0x7]
    %v23 = vlaneseq
    %v24 = vshrl.u32 %v23, 7
    %v25 = vsub.s32 0, %v24
    %v26 = vrot.slane %v21, %v25
    %v27 = vlaneseq
    %v28 = vshrl.u32 %v27, 7
    %v29 = vsub.s32 1, %v28
    %v30 = vrot.slane %v21, %v29
    %v31 = vlaneseq
    %v32 = vshrl.u32 %v31, 7
    %v33 = vsub.s32 2, %v32
    %v34 = vrot.slane %v21, %v33
    %v35 = vcombine.low %v26, %v30
    %v37 = vunpack.c.l.s4 1983009808
    %v38 = vunpack.c.0.s8 %v37
    %v39 = vlaneseq
    %v40 = vshrl.u32 %v39, 7
    %v41 = vsub.s32 %v38, %v40
    %v42 = vrot.slane %v35, %v41
    %v44 = vunpack.c.l.s4 1983009808
    %v45 = vunpack.c.0.s8 %v44
    %v46 = vlaneseq
    %v47 = vshrl.u32 %v46, 7
    %v48 = vsub.s32 %v45, %v47
    %v49 = vrot.slane %v34, %v48
    %v50 = vcombine.low %v42, %v49
    %52 = vst [vmem:[#allocation5] sm:$0x3f] %v50
    // Predicated region
    $region10: #{tpu_custom_call.1} parent=1 // pred_check
      _
    $region11: #{tpu_custom_call.1} parent=1 // pred_check_branch
      %54 = sbr.rel (0) target = $region13
    $region12: #{tpu_custom_call.1} parent=1 // pred_region
      %s56 = ssub.s32 96, 96
      %57 = vsyncadd [#allocation4], %s56
      %s59 = sshll.u32 [#allocation5], 4
      %s60 = int_to_ptr.vmem [resolvable:$true] %s59
      %62 = dma.vmem_to_hbm [thread:$0]  %s60, 96, %s1, [#allocation4]
    $region13: #{tpu_custom_call.1} parent=1 // pred_fallthru
      _
    // Predicated region
    $region14: #{tpu_custom_call.1} parent=1 // pred_check
      _
    $region15: #{tpu_custom_call.1} parent=1 // pred_check_branch
      %64 = sbr.rel (0) target = $region17
    $region16: #{tpu_custom_call.1} parent=1 // pred_region
      %65 = dma.done [#allocation4], 96
    $region17: #{tpu_custom_call.1} parent=1 // pred_fallthru
      _
    %66 = vsyncpa [#allocation3], 1
    %67 = vsyncpa [#allocation4], 1

</llo_original>
